<compile_context>
chip_gen: v7x
topology: tpu7x:2x2x1
jax: 0.10.0
libtpu: 0.0.40
codegen_flags: <defaults>
</compile_context>

<pallas_src>
import jax
import jax.numpy as jnp
from jax import lax
from jax.experimental import pallas as pl
from jax.experimental.pallas import tpu as pltpu


def _round_up(x, m):
    return ((x + m - 1) // m) * m


def _gemm_bias_kernel(a_ref, w_ref, b_ref, o_ref):
    """Pure GEMM + bias. One MXU matmul per grid step, lane-dense store.

    a_ref: (TM, K)         im2col patch rows for this row tile
    w_ref: (K, COUT_PAD)   flattened conv weight, Cout zero-padded to 128 lanes
    b_ref: (1, COUT_PAD)   bias (zero-padded)
    o_ref: (TM, COUT_PAD)  output rows (lane-dense, unmasked stores)
    """
    acc = jnp.dot(a_ref[...], w_ref[...], preferred_element_type=jnp.float32)
    acc = acc + b_ref[...].astype(jnp.float32)
    o_ref[...] = acc.astype(o_ref.dtype)


def conv_layer_forward(x_nchw, weight, bias, *, stride):
    """ReflectionPad2d(k//2) + Conv2d(stride), matching PyTorch ConvLayer.

    x_nchw : (N, Cin, H, W)
    weight : (Cout, Cin, KH, KW)   (PyTorch layout)
    bias   : (Cout,)
    returns: (N, Cout, H_out, W_out)
    """
    n, cin, h, w = x_nchw.shape
    cout, cin_w, kh, kw = weight.shape
    assert cin == cin_w
    pad_h, pad_w = kh // 2, kw // 2
    # jnp.pad(mode="reflect") (like nn.ReflectionPad2d) requires pad < dim.
    assert pad_h < h and pad_w < w, "reflection pad must be smaller than spatial dims"

    # --- Wrapper glue (XLA): reflection pad, NCHW -> NHWC, im2col. ---
    x_pad = jnp.pad(
        x_nchw, ((0, 0), (0, 0), (pad_h, pad_h), (pad_w, pad_w)), mode="reflect"
    )
    x_pad = jnp.transpose(x_pad, (0, 2, 3, 1))  # (N, Hp, Wp, Cin)
    hp, wp = x_pad.shape[1], x_pad.shape[2]
    h_out = (hp - kh) // stride + 1
    w_out = (wp - kw) // stride + 1

    # im2col: the conv stride is folded here (strided slices over HBM-resident
    # data), so the kernel sees only contiguous, lane-friendly GEMM operands.
    taps = []
    for ih in range(kh):
        for iw in range(kw):
            taps.append(
                lax.slice(
                    x_pad,
                    (0, ih, iw, 0),
                    (n, ih + (h_out - 1) * stride + 1,
                     iw + (w_out - 1) * stride + 1, cin),
                    (1, stride, stride, 1),
                )
            )
    patches = jnp.concatenate(taps, axis=-1)  # (N, Ho, Wo, KH*KW*Cin)
    k_dim = kh * kw * cin
    m_rows = n * h_out * w_out
    patches = patches.reshape(m_rows, k_dim)

    # Flatten weight to (KH*KW*Cin, Cout); row index = (ih*KW + iw)*Cin + ci.
    w_mat = jnp.transpose(weight, (2, 3, 1, 0)).reshape(k_dim, cout)
    # Lane-dense output: pad Cout up to a multiple of 128 (sliced off below).
    cout_pad = _round_up(cout, 128)
    w_mat = jnp.pad(w_mat, ((0, 0), (0, cout_pad - cout)))
    b_mat = jnp.pad(bias.reshape(1, cout), ((0, 0), (0, cout_pad - cout)))
    # NOTE: on v6e/v7x, casting `patches`/`w_mat` to bf16 here (keeping the
    # f32 accumulator via preferred_element_type) halves operand DMA bytes
    # once the GEMM is MXU-bound; kept f32 here to match the f32 reference.

    # Row tiling: multiple grid steps -> pipelined DMA and work for both
    # TensorCores on v7x (harmless serial loop on v5e/v6e).
    tm = min(128, _round_up(m_rows, 8))
    m_pad = _round_up(m_rows, tm)
    if m_pad != m_rows:
        patches = jnp.pad(patches, ((0, m_pad - m_rows), (0, 0)))

    out_rows = pl.pallas_call(
        _gemm_bias_kernel,
        out_shape=jax.ShapeDtypeStruct((m_pad, cout_pad), x_nchw.dtype),
        grid_spec=pltpu.PrefetchScalarGridSpec(
            num_scalar_prefetch=0,
            grid=(m_pad // tm,),
            in_specs=[
                pl.BlockSpec((tm, k_dim), lambda i: (i, 0)),
                pl.BlockSpec((k_dim, cout_pad), lambda i: (0, 0)),
                pl.BlockSpec((1, cout_pad), lambda i: (0, 0)),
            ],
            out_specs=pl.BlockSpec((tm, cout_pad), lambda i: (i, 0)),
        ),
        compiler_params=pltpu.CompilerParams(
            dimension_semantics=("parallel",),
            vmem_limit_bytes=32 * 1024 * 1024,
        ),
    )(patches, w_mat, b_mat)

    out = out_rows[:m_rows, :cout].reshape(n, h_out, w_out, cout)
    return jnp.transpose(out, (0, 3, 1, 2))  # back to NCHW


def _reference_conv_layer(x_nchw, weight, bias, *, stride):
    pad_h, pad_w = weight.shape[2] // 2, weight.shape[3] // 2
    x_pad = jnp.pad(
        x_nchw, ((0, 0), (0, 0), (pad_h, pad_h), (pad_w, pad_w)), mode="reflect"
    )
    out = lax.conv_general_dilated(
        x_pad, weight, window_strides=(stride, stride), padding="VALID",
        dimension_numbers=("NCHW", "OIHW", "NCHW"),
    )
    return out + bias.reshape(1, -1, 1, 1)


if __name__ == "__main__":
    # Module config (synthetic, deterministic): ConvLayer(4, 8, kernel_size=3, stride=1)
    in_channels, out_channels, kernel_size, stride = 4, 8, 3, 1
    batch, height, width = 2, 16, 16

    key = jax.random.PRNGKey(0)
    kx, kw_, kb = jax.random.split(key, 3)

    x = jax.random.normal(kx, (batch, in_channels, height, width), dtype=jnp.float32)
    fan_in = in_channels * kernel_size * kernel_size
    bound = 1.0 / jnp.sqrt(fan_in)
    weight = jax.random.uniform(
        kw_, (out_channels, in_channels, kernel_size, kernel_size),
        minval=-bound, maxval=bound, dtype=jnp.float32)
    bias = jax.random.uniform(kb, (out_channels,), minval=-bound, maxval=bound,
                              dtype=jnp.float32)

    out = conv_layer_forward(x, weight, bias, stride=stride)
    out = jax.block_until_ready(out)

    ref = _reference_conv_layer(x, weight, bias, stride=stride)
    assert out.shape == (batch, out_channels, height // stride, width // stride)
    assert jnp.allclose(out, ref, atol=1e-4, rtol=1e-4), "mismatch vs reference conv"

    print("KERNEL_OK")
</pallas_src>

<mosaic_0001>
module attributes {stable_mosaic.version = 11 : i64} {
  func.func @_gemm_bias_kernel(%arg0: i32, %arg1: memref<128x36xf32, #tpu.memory_space<vmem>>, %arg2: memref<36x128xf32, #tpu.memory_space<vmem>>, %arg3: memref<1x128xf32, #tpu.memory_space<vmem>>, %arg4: memref<128x128xf32, #tpu.memory_space<vmem>>) attributes {dimension_semantics = [#tpu.dimension_semantics<parallel>], iteration_bounds = array<i64: 4>, scalar_prefetch = 0 : i64, scratch_operands = 0 : i64, tpu.core_type = #tpu.core_type<tc>, window_params = [{transform_indices = @transform_0, window_bounds = array<i64: 128, 36>}, {pipeline_mode = #tpu.pipeline_mode<synchronous>, transform_indices = @transform_1, window_bounds = array<i64: 36, 128>}, {pipeline_mode = #tpu.pipeline_mode<synchronous>, transform_indices = @transform_2, window_bounds = array<i64: 1, 128>}, {transform_indices = @transform_3, window_bounds = array<i64: 128, 128>}]} {
    %c0 = arith.constant 0 : index
    %c0_0 = arith.constant 0 : index
    %0 = vector.load %arg1[%c0, %c0_0] : memref<128x36xf32, #tpu.memory_space<vmem>>, vector<128x36xf32>
    %c0_1 = arith.constant 0 : index
    %c0_2 = arith.constant 0 : index
    %1 = vector.load %arg2[%c0_1, %c0_2] : memref<36x128xf32, #tpu.memory_space<vmem>>, vector<36x128xf32>
    %cst = arith.constant dense<0.000000e+00> : vector<128x128xf32>
    %2 = tpu.matmul %0, %1, %cst {dimension_numbers = #tpu.dot_dimension_numbers<[1], [0], [0], [1], [0, 0, 1, 1], [], []>} : vector<128x36xf32>, vector<36x128xf32>, vector<128x128xf32> -> vector<128x128xf32>
    %c0_3 = arith.constant 0 : index
    %c0_4 = arith.constant 0 : index
    %3 = vector.load %arg3[%c0_3, %c0_4] : memref<1x128xf32, #tpu.memory_space<vmem>>, vector<1x128xf32>
    %4 = vector.broadcast %3 : vector<1x128xf32> to vector<128x128xf32>
    %5 = arith.addf %2, %4 : vector<128x128xf32>
    %c0_5 = arith.constant 0 : index
    %c0_6 = arith.constant 0 : index
    %6 = vector.load %arg4[%c0_5, %c0_6] : memref<128x128xf32, #tpu.memory_space<vmem>>, vector<128x128xf32>
    tpu.vector_store %arg4[%c0_5, %c0_6], %5 {strides = array<i32>} : memref<128x128xf32, #tpu.memory_space<vmem>>, vector<128x128xf32>,
    return
  }
  func.func @transform_0(%arg0: i32) -> (i32, i32) {
    %c0_i32 = arith.constant 0 : i32
    %c0_i32_0 = arith.constant 0 : i32
    return %arg0, %c0_i32 : i32, i32
  }
  func.func @transform_1(%arg0: i32) -> (i32, i32) {
    %c0_i32 = arith.constant 0 : i32
    %c0_i32_0 = arith.constant 0 : i32
    %c0_i32_1 = arith.constant 0 : i32
    return %c0_i32, %c0_i32_0 : i32, i32
  }
  func.func @transform_2(%arg0: i32) -> (i32, i32) {
    %c0_i32 = arith.constant 0 : i32
    %c0_i32_0 = arith.constant 0 : i32
    %c0_i32_1 = arith.constant 0 : i32
    return %c0_i32, %c0_i32_0 : i32, i32
  }
  func.func @transform_3(%arg0: i32) -> (i32, i32) {
    %c0_i32 = arith.constant 0 : i32
    %c0_i32_0 = arith.constant 0 : i32
    return %arg0, %c0_i32 : i32, i32
  }
}

</mosaic_0001>

<llo_original>
// kernel: tpu_custom_call.1
$region0: #{tpu_custom_call.1}
  #allocation0 [shape = 'u32[]', space=smem, size = 0x4, offset = 0x4, fixed_abs, tag = 'smem constant byte address 0x4 - core index']
  #allocation1 [shape = 'u32[144,128]{1,0:T(1,128)}', space=vmem, size = 0x12000, scoped, tag = 'internal scratch']
  %s0 = inlined_call_operand.vmem [shape: f32[512,36], index: 0, kind: input, shape index: {}]
  %s1 = inlined_call_operand.vmem [shape: f32[36,128], index: 1, kind: input, shape index: {}]
  %s2 = inlined_call_operand.vmem [shape: f32[1,128], index: 2, kind: input, shape index: {}]
  %s3 = inlined_call_operand.hbm [shape: f32[512,128], index: 3, kind: output, shape index: {}]
  %s4 = sld [smem:[#allocation0]]
  $region45: #{tpu_custom_call.1} parent=0
    _
  %s6 = ssub.s32 1, %s4
  %s7 = scalar_select 0, %s6, %s4
  $region1: #{tpu_custom_call.1} parent=0
    #allocation2 [shape = 'u8[131072]{0}', space=vmem, size = 0x20000, scoped, tag = 'output window, operand 0']
    #allocation3 [shape = 's32[2]{0}', space=sflag, size = 0x8, scoped, tag = 'scoped memory for tpu_custom_call.1']
    %8 = vsyncpa [#allocation3], 0
    %s9 = scalar_lea.sflag [#allocation3], 1
    %10 = vsyncpa %s9, 0
    loop: start=0, step=1, limit=6
    $region2: #{tpu_custom_call.1} parent=1 // loop_pre_header
      _
    $region3: #{tpu_custom_call.1} parent=1 // loop_header
      %s12 = sphi 0, %s16
      %p13 = scmp.ge.s32.totalorder %s12, 6
      %s22 = sphi 0, %s24
      %s25 = sphi 0, %s22
      %s26 = sphi 0, %s25
      %s42 = sphi 0, %s26
      %s46 = sphi 0, %s46
      %s48 = sphi 0, %s46
      %s49 = sphi 0, %s48
      %s63 = sphi 0, %s49
      %s67 = sphi 0, %s67
      %s69 = sphi 0, %s67
      %s70 = sphi 0, %s69
      %s84 = sphi 0, %s70
      %s90 = sphi 0, %s92
      %s93 = sphi 0, %s90
      %s94 = sphi 0, %s93
      %s110 = sphi 0, %s94
    $region4: #{tpu_custom_call.1} parent=1 // loop_header_branch
      %15 = sbr.rel (%p13) target = $region8
    $region5: #{tpu_custom_call.1} parent=1 // loop_body
      %s17 = ssub.s32 %s12, 1
      %s18 = ssub.s32 %s12, 2
      %s19 = sadd.s32 %s12, 1
      %s20 = ssub.s32 %s12, %s19
      %p21 = scmp.eq.s32.totalorder %s20, 0
      %s23 = sadd.s32 %s22, 1
      %s24 = scalar_select %p21, %s22, %s23
      %p27 = pneg %p21
      %p28 = scmp.eq.s32.totalorder %s12, 3
      %p29 = por %p27, %p28
      %p30 = scmp.ne.s32.totalorder %s22, %s25
      %p31 = scmp.eq.s32.totalorder %s12, 0
      %p32 = por %p30, %p31
      %p33 = scmp.ne.s32.totalorder %s22, %s25
      %p34 = scmp.eq.s32.totalorder %s17, 3
      %p35 = por %p33, %p34
      %p36 = scmp.ne.s32.totalorder %s25, %s26
      %p37 = scmp.eq.s32.totalorder %s17, 0
      %p38 = por %p36, %p37
      %p39 = scmp.ne.s32.totalorder %s25, %s26
      %p40 = scmp.eq.s32.totalorder %s18, 3
      %p41 = por %p39, %p40
      %p43 = scmp.ne.s32.totalorder %s26, %s42
      %p44 = scmp.eq.s32.totalorder %s18, 0
      %p45 = por %p43, %p44
      %s47 = sadd.s32 %s46, 1
      %p50 = scmp.eq.s32.totalorder %s12, 3
      %p51 = scmp.ne.s32.totalorder %s46, %s48
      %p52 = scmp.eq.s32.totalorder %s12, 0
      %p53 = por %p51, %p52
      %p54 = scmp.ne.s32.totalorder %s46, %s48
      %p55 = scmp.eq.s32.totalorder %s17, 3
      %p56 = por %p54, %p55
      %p57 = scmp.ne.s32.totalorder %s48, %s49
      %p58 = scmp.eq.s32.totalorder %s17, 0
      %p59 = por %p57, %p58
      %p60 = scmp.ne.s32.totalorder %s48, %s49
      %p61 = scmp.eq.s32.totalorder %s18, 3
      %p62 = por %p60, %p61
      %p64 = scmp.ne.s32.totalorder %s49, %s63
      %p65 = scmp.eq.s32.totalorder %s18, 0
      %p66 = por %p64, %p65
      %s68 = sadd.s32 %s67, 1
      %p71 = scmp.eq.s32.totalorder %s12, 3
      %p72 = scmp.ne.s32.totalorder %s67, %s69
      %p73 = scmp.eq.s32.totalorder %s12, 0
      %p74 = por %p72, %p73
      %p75 = scmp.ne.s32.totalorder %s67, %s69
      %p76 = scmp.eq.s32.totalorder %s17, 3
      %p77 = por %p75, %p76
      %p78 = scmp.ne.s32.totalorder %s69, %s70
      %p79 = scmp.eq.s32.totalorder %s17, 0
      %p80 = por %p78, %p79
      %p81 = scmp.ne.s32.totalorder %s69, %s70
      %p82 = scmp.eq.s32.totalorder %s18, 3
      %p83 = por %p81, %p82
      %p85 = scmp.ne.s32.totalorder %s70, %s84
      %p86 = scmp.eq.s32.totalorder %s18, 0
      %p87 = por %p85, %p86
      %s88 = ssub.s32 %s12, %s19
      %p89 = scmp.eq.s32.totalorder %s88, 0
      %s91 = sadd.s32 %s90, 1
      %s92 = scalar_select %p89, %s90, %s91
      %p95 = pneg %p89
      %p96 = scmp.eq.s32.totalorder %s12, 3
      %p97 = por %p95, %p96
      %p98 = scmp.ne.s32.totalorder %s90, %s93
      %p99 = scmp.eq.s32.totalorder %s12, 0
      %p100 = por %p98, %p99
      %p101 = scmp.ne.s32.totalorder %s90, %s93
      %p102 = scmp.eq.s32.totalorder %s17, 3
      %p103 = por %p101, %p102
      %p104 = scmp.ne.s32.totalorder %s93, %s94
      %p105 = scmp.eq.s32.totalorder %s17, 0
      %p106 = por %p104, %p105
      %p107 = scmp.ne.s32.totalorder %s93, %s94
      %p108 = scmp.eq.s32.totalorder %s18, 3
      %p109 = por %p107, %p108
      %p111 = scmp.ne.s32.totalorder %s94, %s110
      %p112 = scmp.eq.s32.totalorder %s18, 0
      %p113 = por %p111, %p112
      %p114 = scmp.le.s32.totalorder 1, %s12
      %p115 = scmp.lt.s32.totalorder %s12, 5
      %p116 = pnand %p114, %p115
      %p117 = pneg %p116
      // Predicated region
      $region9: #{tpu_custom_call.1} parent=5 // pred_check
        _
      $region10: #{tpu_custom_call.1} parent=5 // pred_check_branch
        %119 = sbr.rel (%p116) target = $region12
      $region11: #{tpu_custom_call.1} parent=5 // pred_region
        %s120 = ssub.s32 %s12, 1
        // Predicated region
        $region13: #{tpu_custom_call.1} parent=11 // pred_check
          %p121 = pneg %p59
        $region14: #{tpu_custom_call.1} parent=11 // pred_check_branch
          %123 = sbr.rel (%p121) target = $region16
        $region15: #{tpu_custom_call.1} parent=11 // pred_region
          _
        $region16: #{tpu_custom_call.1} parent=11 // pred_fallthru
          _
        // Predicated region
        $region17: #{tpu_custom_call.1} parent=11 // pred_check
          %p124 = pneg %p80
        $region18: #{tpu_custom_call.1} parent=11 // pred_check_branch
          %126 = sbr.rel (%p124) target = $region20
        $region19: #{tpu_custom_call.1} parent=11 // pred_region
          _
        $region20: #{tpu_custom_call.1} parent=11 // pred_fallthru
          _
      $region12: #{tpu_custom_call.1} parent=5 // pred_fallthru
        _
      %p127 = scmp.lt.s32.totalorder %s12, 4
      // Predicated region
      $region21: #{tpu_custom_call.1} parent=5 // pred_check
        %p128 = pneg %p127
      $region22: #{tpu_custom_call.1} parent=5 // pred_check_branch
        %130 = sbr.rel (%p128) target = $region24
      $region23: #{tpu_custom_call.1} parent=5 // pred_region
        // Predicated region
        $region25: #{tpu_custom_call.1} parent=23 // pred_check
          %p131 = pneg %p32
        $region26: #{tpu_custom_call.1} parent=23 // pred_check_branch
          %133 = sbr.rel (%p131) target = $region28
        $region27: #{tpu_custom_call.1} parent=23 // pred_region
          %s134 = smul.u32 16, %s12
          %p135 = scmp.lt.s32.totalorder %s134, 63
          %s136 = scalar_select %p135, %s134, 63
          %s137 = smul.addr %s136, 8
          %s138 = scalar_lea.vmem %s0, %s137
          %s139 = smul.u32 16, %s12
        $region28: #{tpu_custom_call.1} parent=23 // pred_fallthru
          _
      $region24: #{tpu_custom_call.1} parent=5 // pred_fallthru
        _
      %p140 = scmp.le.s32.totalorder 1, %s12
      %p141 = scmp.lt.s32.totalorder %s12, 5
      %p142 = pnand %p140, %p141
      %p143 = pneg %p142
      // Predicated region
      $region29: #{tpu_custom_call.1} parent=5 // pred_check
        _
      $region30: #{tpu_custom_call.1} parent=5 // pred_check_branch
        %145 = sbr.rel (%p142) target = $region32
      $region31: #{tpu_custom_call.1} parent=5 // pred_region
        %s146 = ssub.s32 %s12, 1
        %s147 = smul.u32 16, %s17
        %p148 = scmp.lt.s32.totalorder %s147, 63
        %s149 = scalar_select %p148, %s147, 63
        %s150 = smul.addr %s149, 8
        %s151 = scalar_lea.vmem %s0, %s150
        %p152 = pneg %p38
        %p153 = pneg %p35
        %p154 = pneg %p59
        %p155 = pneg %p56
        %p156 = pneg %p80
        %p157 = pneg %p77
        %p158 = pneg %p106
        %p159 = pneg %p103
        %s160 = sand.u32 %s93, 1
        %s161 = scalar_lea.sflag [#allocation3], %s160
        %s162 = sand.u32 %s93, 1
        %s163 = smul.addr %s162, 128
        %s164 = scalar_lea.vmem [#allocation2], %s163
        %s165 = smul.u32 16, %s17
        %p166 = scmp.lt.s32.totalorder %s165, 63
        %s167 = scalar_select %p166, %s165, 63
        %s168 = smul.addr %s167, 8
        %s169 = scalar_lea.vmem %s0, %s168
        %s170 = smul.u32 16, %s17
        %s171 = smul.u32 16, %s17
        %v172 = vld [vmem:[%s169] sm:$0xff]
        %v173 = vld [vmem:[%s169 + $0x8] sm:$0xff]
        %v174 = vld [vmem:[%s169 + $0x10] sm:$0xff]
        %v175 = vld [vmem:[%s169 + $0x18] sm:$0xff]
        %v176 = vld [vmem:[%s169 + $0x20] sm:$0xff]
        %v177 = vld [vmem:[%s169 + $0x28] sm:$0xff]
        %v178 = vld [vmem:[%s169 + $0x30] sm:$0xff]
        %v179 = vld [vmem:[%s169 + $0x38] sm:$0xff]
        %v180 = vld [vmem:[%s169 + $0x40] sm:$0xff]
        %v181 = vld [vmem:[%s169 + $0x48] sm:$0xff]
        %v182 = vld [vmem:[%s169 + $0x50] sm:$0xff]
        %v183 = vld [vmem:[%s169 + $0x58] sm:$0xff]
        %v184 = vld [vmem:[%s169 + $0x60] sm:$0xff]
        %v185 = vld [vmem:[%s169 + $0x68] sm:$0xff]
        %v186 = vld [vmem:[%s169 + $0x70] sm:$0xff]
        %v187 = vld [vmem:[%s169 + $0x78] sm:$0xff]
        %v188 = vld [vmem:[%s1] sm:$0xff]
        %v189 = vld [vmem:[%s1 + $0x8] sm:$0xff]
        %v190 = vld [vmem:[%s1 + $0x10] sm:$0xff]
        %v191 = vld [vmem:[%s1 + $0x18] sm:$0xff]
        %v192 = vld [vmem:[%s1 + $0x20] sm:$0xf]
        %v193 = vld [vmem:[%s2] sm:$0x1]
        %v195 = vlaneseq
        %v196 = vshrl.u32 %v195, 7
        %v197 = vsub.s32 0, %v196
        %v198 = vrot.slane %v193, %v197
        %vm200 = vcmask 293888
        %v202 = vsel %vm200, %v172, 0
        %v205 = vsel %vm200, %v173, 0
        %v208 = vsel %vm200, %v174, 0
        %v211 = vsel %vm200, %v175, 0
        %v214 = vsel %vm200, %v176, 0
        %v217 = vsel %vm200, %v177, 0
        %v220 = vsel %vm200, %v178, 0
        %v223 = vsel %vm200, %v179, 0
        %v226 = vsel %vm200, %v180, 0
        %v229 = vsel %vm200, %v181, 0
        %v232 = vsel %vm200, %v182, 0
        %v235 = vsel %vm200, %v183, 0
        %v238 = vsel %vm200, %v184, 0
        %v241 = vsel %vm200, %v185, 0
        %v244 = vsel %vm200, %v186, 0
        %v247 = vsel %vm200, %v187, 0
        %vm249 = vcmask 1043456
        %v251 = vsel %vm249, %v192, 0
        %253 = vmatprep.subr.mxu0 0.0
        %254 = vmatpush1.msra.mxu0 %v188
        %255 = vmatprep.subr.mxu0 0.0
        %256 = vmatpush1.msra.mxu0 %v189
        %257 = vmatprep.subr.mxu0 0.0
        %258 = vmatpush1.msra.mxu0 %v190
        %259 = vmatprep.subr.mxu0 0.0
        %260 = vmatpush1.msra.mxu0 %v191
        %261 = vmatprep.subr.mxu0 0.0
        %262 = vmatpush1.msra.mxu0 %v251
        %263 = vmatprep.subr.mxu0 0.0
        %264 = vmatpush1.msra.mxu0 0.0
        %265 = vmatprep.subr.mxu0 0.0
        %266 = vmatpush1.msra.mxu0 0.0
        %267 = vmatprep.subr.mxu0 0.0
        %268 = vmatpush1.msra.mxu0 0.0
        %269 = vmatprep.subr.mxu0 0.0
        %270 = vmatpush1.msra.mxu0 0.0
        %271 = vmatprep.subr.mxu0 0.0
        %272 = vmatpush1.msra.mxu0 0.0
        %273 = vmatprep.subr.mxu0 0.0
        %274 = vmatpush1.msra.mxu0 0.0
        %275 = vmatprep.subr.mxu0 0.0
        %276 = vmatpush1.msra.mxu0 0.0
        %277 = vmatprep.subr.mxu0 0.0
        %278 = vmatpush1.msra.mxu0 0.0
        %279 = vmatprep.subr.mxu0 0.0
        %280 = vmatpush1.msra.mxu0 0.0
        %281 = vmatprep.subr.mxu0 0.0
        %282 = vmatpush1.msra.mxu0 0.0
        %283 = vmatprep.subr.mxu0 0.0
        %284 = vmatpush1.msra.mxu0 0.0
        %285 = vmatprep.subr.mxu0 0.0
        %286 = vmatpush1.msra.mxu0 0.0
        %287 = vmatprep.subr.mxu0 0.0
        %288 = vmatpush1.msra.mxu0 0.0
        %289 = vmatprep.subr.mxu0 0.0
        %290 = vmatpush1.msra.mxu0 0.0
        %291 = vmatprep.subr.mxu0 0.0
        %292 = vmatpush1.msra.mxu0 0.0
        %293 = vmatprep.subr.mxu0 0.0
        %294 = vmatpush1.msra.mxu0 0.0
        %295 = vmatprep.subr.mxu0 0.0
        %296 = vmatpush1.msra.mxu0 0.0
        %297 = vmatprep.subr.mxu0 0.0
        %298 = vmatpush1.msra.mxu0 0.0
        %299 = vmatprep.subr.mxu0 0.0
        %300 = vmatpush1.msra.mxu0 0.0
        %301 = vmatprep.subr.mxu0 0.0
        %302 = vmatpush1.msra.mxu0 0.0
        %303 = vmatprep.subr.mxu0 0.0
        %304 = vmatpush1.msra.mxu0 0.0
        %305 = vmatprep.subr.mxu0 0.0
        %306 = vmatpush1.msra.mxu0 0.0
        %307 = vmatprep.subr.mxu0 0.0
        %308 = vmatpush1.msra.mxu0 0.0
        %309 = vmatprep.subr.mxu0 0.0
        %310 = vmatpush1.msra.mxu0 0.0
        %311 = vmatprep.subr.mxu0 0.0
        %312 = vmatpush1.msra.mxu0 0.0
        %313 = vmatprep.subr.mxu0 0.0
        %314 = vmatpush1.msra.mxu0 0.0
        %315 = vmatprep.subr.mxu0 0.0
        %316 = vmatpush1.msra.mxu0 0.0
        %317 = vmatprep.mubr.f32.mxu0 0.0
        %318 = vmatmul.mubr.f32.gmra.mrb[0].mxu0 %v202
        %v319 = vpop.f32.mrb[0].mxu0
        %v320 = vadd.f32 %v198, %v319
        %v321 = vpop.f32.mrb[0].mxu0
        %322 = vmatprep.mubr.f32.mxu0 0.0
        %323 = vmatmul.mubr.f32.gmra.mrb[0].mxu0 %v205
        %v324 = vpop.f32.mrb[0].mxu0
        %v325 = vadd.f32 %v198, %v324
        %v326 = vpop.f32.mrb[0].mxu0
        %327 = vmatprep.mubr.f32.mxu0 0.0
        %328 = vmatmul.mubr.f32.gmra.mrb[0].mxu0 %v208
        %v329 = vpop.f32.mrb[0].mxu0
        %v330 = vadd.f32 %v198, %v329
        %v331 = vpop.f32.mrb[0].mxu0
        %332 = vmatprep.mubr.f32.mxu0 0.0
        %333 = vmatmul.mubr.f32.gmra.mrb[0].mxu0 %v211
        %v334 = vpop.f32.mrb[0].mxu0
        %v335 = vadd.f32 %v198, %v334
        %v336 = vpop.f32.mrb[0].mxu0
        %337 = vmatprep.mubr.f32.mxu0 0.0
        %338 = vmatmul.mubr.f32.gmra.mrb[0].mxu0 %v214
        %v339 = vpop.f32.mrb[0].mxu0
        %v340 = vadd.f32 %v198, %v339
        %v341 = vpop.f32.mrb[0].mxu0
        %342 = vmatprep.mubr.f32.mxu0 0.0
        %343 = vmatmul.mubr.f32.gmra.mrb[0].mxu0 %v217
        %v344 = vpop.f32.mrb[0].mxu0
        %v345 = vadd.f32 %v198, %v344
        %v346 = vpop.f32.mrb[0].mxu0
        %347 = vmatprep.mubr.f32.mxu0 0.0
        %348 = vmatmul.mubr.f32.gmra.mrb[0].mxu0 %v220
        %v349 = vpop.f32.mrb[0].mxu0
        %v350 = vadd.f32 %v198, %v349
        %v351 = vpop.f32.mrb[0].mxu0
        %352 = vmatprep.mubr.f32.mxu0 0.0
        %353 = vmatmul.mubr.f32.gmra.mrb[0].mxu0 %v223
        %v354 = vpop.f32.mrb[0].mxu0
        %v355 = vadd.f32 %v198, %v354
        %v356 = vpop.f32.mrb[0].mxu0
        %357 = vmatprep.mubr.f32.mxu0 0.0
        %358 = vmatmul.mubr.f32.gmra.mrb[0].mxu0 %v226
        %v359 = vpop.f32.mrb[0].mxu0
        %v360 = vadd.f32 %v198, %v359
        %v361 = vpop.f32.mrb[0].mxu0
        %362 = vmatprep.mubr.f32.mxu0 0.0
        %363 = vmatmul.mubr.f32.gmra.mrb[0].mxu0 %v229
        %v364 = vpop.f32.mrb[0].mxu0
        %v365 = vadd.f32 %v198, %v364
        %v366 = vpop.f32.mrb[0].mxu0
        %367 = vmatprep.mubr.f32.mxu0 0.0
        %368 = vmatmul.mubr.f32.gmra.mrb[0].mxu0 %v232
        %v369 = vpop.f32.mrb[0].mxu0
        %v370 = vadd.f32 %v198, %v369
        %v371 = vpop.f32.mrb[0].mxu0
        %372 = vmatprep.mubr.f32.mxu0 0.0
        %373 = vmatmul.mubr.f32.gmra.mrb[0].mxu0 %v235
        %v374 = vpop.f32.mrb[0].mxu0
        %v375 = vadd.f32 %v198, %v374
        %v376 = vpop.f32.mrb[0].mxu0
        %377 = vmatprep.mubr.f32.mxu0 0.0
        %378 = vmatmul.mubr.f32.gmra.mrb[0].mxu0 %v238
        %v379 = vpop.f32.mrb[0].mxu0
        %v380 = vadd.f32 %v198, %v379
        %v381 = vpop.f32.mrb[0].mxu0
        %382 = vmatprep.mubr.f32.mxu0 0.0
        %383 = vmatmul.mubr.f32.gmra.mrb[0].mxu0 %v241
        %v384 = vpop.f32.mrb[0].mxu0
        %v385 = vadd.f32 %v198, %v384
        %v386 = vpop.f32.mrb[0].mxu0
        %387 = vmatprep.mubr.f32.mxu0 0.0
        %388 = vmatmul.mubr.f32.gmra.mrb[0].mxu0 %v244
        %v389 = vpop.f32.mrb[0].mxu0
        %v390 = vadd.f32 %v198, %v389
        %v391 = vpop.f32.mrb[0].mxu0
        %392 = vmatprep.mubr.f32.mxu0 0.0
        %393 = vmatmul.mubr.f32.gmra.mrb[0].mxu0 %v247
        %v394 = vpop.f32.mrb[0].mxu0
        %v395 = vadd.f32 %v198, %v394
        %v396 = vpop.f32.mrb[0].mxu0
        %397 = vdwg.mxu0
        %398 = vst [vmem:[%s164] sm:$0xff] %v320
        %399 = vst [vmem:[%s164 + $0x8] sm:$0xff] %v325
        %400 = vst [vmem:[%s164 + $0x10] sm:$0xff] %v330
        %401 = vst [vmem:[%s164 + $0x18] sm:$0xff] %v335
        %402 = vst [vmem:[%s164 + $0x20] sm:$0xff] %v340
        %403 = vst [vmem:[%s164 + $0x28] sm:$0xff] %v345
        %404 = vst [vmem:[%s164 + $0x30] sm:$0xff] %v350
        %405 = vst [vmem:[%s164 + $0x38] sm:$0xff] %v355
        %406 = vst [vmem:[%s164 + $0x40] sm:$0xff] %v360
        %407 = vst [vmem:[%s164 + $0x48] sm:$0xff] %v365
        %408 = vst [vmem:[%s164 + $0x50] sm:$0xff] %v370
        %409 = vst [vmem:[%s164 + $0x58] sm:$0xff] %v375
        %410 = vst [vmem:[%s164 + $0x60] sm:$0xff] %v380
        %411 = vst [vmem:[%s164 + $0x68] sm:$0xff] %v385
        %412 = vst [vmem:[%s164 + $0x70] sm:$0xff] %v390
        %413 = vst [vmem:[%s164 + $0x78] sm:$0xff] %v395
        %s414 = sand.u32 %s93, 1
        %s415 = scalar_lea.sflag [#allocation3], %s414
        %s416 = sand.u32 %s93, 1
        %s417 = smul.addr %s416, 128
        %s418 = scalar_lea.vmem [#allocation2], %s417
        // Predicated region
        $region33: #{tpu_custom_call.1} parent=31 // pred_check
          %p419 = pneg %p103
        $region34: #{tpu_custom_call.1} parent=31 // pred_check_branch
          %421 = sbr.rel (%p419) target = $region36
        $region35: #{tpu_custom_call.1} parent=31 // pred_region
          %s422 = smul.u32 16, %s17
          %s424 = ssub.s32 2048, 2048
          %425 = vsyncadd %s415, %s424
          %s426 = smul.addr %s422, 128
          %s427 = scalar_lea.hbm %s3, %s426
          %s428 = sshll.u32 %s418, 4
          %s429 = int_to_ptr.vmem [resolvable:$true] %s428
          %434 = dma.vmem_to_hbm [thread:$0]  %s429, 2048, %s427, %s415, 128, 128, 8
        $region36: #{tpu_custom_call.1} parent=31 // pred_fallthru
          _
      $region32: #{tpu_custom_call.1} parent=5 // pred_fallthru
        _
      %p435 = scmp.le.s32.totalorder 2, %s12
      // Predicated region
      $region37: #{tpu_custom_call.1} parent=5 // pred_check
        %p436 = pneg %p435
      $region38: #{tpu_custom_call.1} parent=5 // pred_check_branch
        %438 = sbr.rel (%p436) target = $region40
      $region39: #{tpu_custom_call.1} parent=5 // pred_region
        %s439 = ssub.s32 %s12, 2
        // Predicated region
        $region41: #{tpu_custom_call.1} parent=39 // pred_check
          %p440 = pneg %p109
        $region42: #{tpu_custom_call.1} parent=39 // pred_check_branch
          %442 = sbr.rel (%p440) target = $region44
        $region43: #{tpu_custom_call.1} parent=39 // pred_region
          %s443 = sand.u32 %s94, 1
          %s444 = scalar_lea.sflag [#allocation3], %s443
          %s445 = sand.u32 %s94, 1
          %s446 = smul.addr %s445, 128
          %s447 = scalar_lea.vmem [#allocation2], %s446
          %448 = dma.done %s444, 2048
        $region44: #{tpu_custom_call.1} parent=39 // pred_fallthru
          _
      $region40: #{tpu_custom_call.1} parent=5 // pred_fallthru
        _
    $region6: #{tpu_custom_call.1} parent=1 // loop_footer
      %s16 = sadd.s32 1, %s12
    $region7: #{tpu_custom_call.1} parent=1 // loop_footer_branch
      %11 = sbr.rel target = $region3
    $region8: #{tpu_custom_call.1} parent=1 // loop_exit
      _
    %449 = vsyncpa [#allocation3], 1
    %s450 = scalar_lea.sflag [#allocation3], 1
    %451 = vsyncpa %s450, 1

</llo_original>
